<compile_context>
chip_gen: v6e
topology: v6e:2x2x1
jax: 0.10.0
libtpu: 0.0.40
codegen_flags: <defaults>
</compile_context>

<pallas_src>
import functools

import numpy as np
import jax
import jax.numpy as jnp
from jax.experimental import pallas as pl
from jax.experimental.pallas import tpu as pltpu

LANES = 128


def _round_up(n, m):
    return ((n + m - 1) // m) * m


# --------------------------------------------------------------------------
# Kernel: one batch tile (TB rows) through the whole dueling MLP.
# All weights are padded/fused (dueling mean pre-folded), resident in VMEM.
# --------------------------------------------------------------------------
def dueling_mlp_kernel(x_ref,
                       w1_ref, b1_ref,
                       w2_ref, b2_ref,
                       wh1_ref, bh1_ref,
                       wh2_ref, bh2_ref,
                       q_ref):
    x = x_ref[...]

    # feature_layer: Linear -> ReLU -> Linear -> ReLU   (MXU, f32 accumulate)
    h = jnp.dot(x, w1_ref[...], preferred_element_type=jnp.float32) + b1_ref[...]
    h = jnp.maximum(h, 0.0)
    f = jnp.dot(h, w2_ref[...], preferred_element_type=jnp.float32) + b2_ref[...]
    f = jnp.maximum(f, 0.0)

    # Fused heads, stage 1: [value_hidden | advantage_hidden] in ONE matmul.
    hh = jnp.dot(f, wh1_ref[...], preferred_element_type=jnp.float32) + bh1_ref[...]
    hh = jnp.maximum(hh, 0.0)

    # Fused heads, stage 2: dueling combination is baked into the weights, so
    # this single lane-dense matmul directly produces q in columns [0, A) and
    # exact zeros in the padded lanes.  Plain unmasked store.
    q = jnp.dot(hh, wh2_ref[...], preferred_element_type=jnp.float32) + bh2_ref[...]
    q_ref[...] = q.astype(q_ref.dtype)


# --------------------------------------------------------------------------
# Wrapper: pads batch & feature dims, builds the batch grid, slices outputs.
# --------------------------------------------------------------------------
def dueling_mlp_forward(x, packed_params, num_actions, *, block_batch=256):
    (w1, b1, w2, b2, wh1, bh1, wh2, bh2) = packed_params
    batch, d_in = x.shape
    d_in_pad = w1.shape[0]
    out_pad = wh2.shape[1]

    # Batch tile: 256 rows for real workloads, shrink (8-aligned) for tiny demos.
    tb = block_batch if batch >= block_batch else _round_up(batch, 8)
    b_pad = _round_up(batch, tb)

    x_p = jnp.pad(x.astype(jnp.float32),
                  ((0, b_pad - batch), (0, d_in_pad - d_in)))

    params = (w1, b1, w2, b2, wh1, bh1, wh2, bh2)

    def resident(p):
        # Same block every grid step -> weight stays in VMEM, no re-DMA.
        return pl.BlockSpec(p.shape, lambda i: (0, 0))

    flops = 2 * b_pad * (w1.shape[0] * w1.shape[1]
                         + w2.shape[0] * w2.shape[1]
                         + wh1.shape[0] * wh1.shape[1]
                         + wh2.shape[0] * wh2.shape[1])
    bytes_accessed = 4 * (x_p.size + b_pad * out_pad + sum(p.size for p in params))

    q_pad = pl.pallas_call(
        dueling_mlp_kernel,
        out_shape=jax.ShapeDtypeStruct((b_pad, out_pad), jnp.float32),
        grid_spec=pltpu.PrefetchScalarGridSpec(
            num_scalar_prefetch=0,
            grid=(b_pad // tb,),
            in_specs=[pl.BlockSpec((tb, d_in_pad), lambda i: (i, 0))]
                     + [resident(p) for p in params],
            out_specs=pl.BlockSpec((tb, out_pad), lambda i: (i, 0)),
        ),
        compiler_params=pltpu.CompilerParams(
            dimension_semantics=("parallel",)),
        cost_estimate=pl.CostEstimate(flops=flops, transcendentals=0,
                                      bytes_accessed=bytes_accessed),
    )(x_p, *params)

    return q_pad[:batch, :num_actions]


# --------------------------------------------------------------------------
# Parameter construction: orthogonal init (gain sqrt(2), zero bias) matching
# DuelingMLP._init_weights, then pad/fuse into the kernel's layout.
# --------------------------------------------------------------------------
def orthogonal_linear(key, in_dim, out_dim, gain):
    # PyTorch weight is (out, in); build orthogonal there, transpose to (in, out).
    rows, cols = out_dim, in_dim
    a = jax.random.normal(key, (max(rows, cols), min(rows, cols)), dtype=jnp.float32)
    q, r = jnp.linalg.qr(a)
    q = q * jnp.sign(jnp.diagonal(r))
    if rows < cols:
        q = q.T
    w_torch = gain * q[:rows, :cols]              # (out, in)
    w = jnp.asarray(w_torch.T, jnp.float32)       # (in, out)
    b = jnp.zeros((1, out_dim), jnp.float32)
    return w, b


def make_params(key, input_dim, output_dim, hidden_dims):
    gain = float(np.sqrt(2.0))
    h0, h1 = hidden_dims
    half = h1 // 2
    keys = jax.random.split(key, 6)
    w1, b1 = orthogonal_linear(keys[0], input_dim, h0, gain)
    w2, b2 = orthogonal_linear(keys[1], h0, h1, gain)
    wv1, bv1 = orthogonal_linear(keys[2], h1, half, gain)
    wv2, bv2 = orthogonal_linear(keys[3], half, 1, gain)
    wa1, ba1 = orthogonal_linear(keys[4], h1, half, gain)
    wa2, ba2 = orthogonal_linear(keys[5], half, output_dim, gain)
    return (w1, b1, w2, b2, wv1, bv1, wv2, bv2, wa1, ba1, wa2, ba2)


def prepare_params(raw_params, num_actions):
    """Zero-pad all dims to multiples of 128 lanes, fuse the two heads, and
    fold the dueling combination  q = v + (a - mean(a))  into the stage-2
    weights so the kernel only runs matmuls."""
    (w1, b1, w2, b2, wv1, bv1, wv2, bv2, wa1, ba1, wa2, ba2) = raw_params
    d_in, h0 = w1.shape
    h1 = w2.shape[1]
    half = wv1.shape[1]
    A = num_actions

    d_in_p = _round_up(d_in, LANES)
    h0_p = _round_up(h0, LANES)
    h1_p = _round_up(h1, LANES)
    half_p = _round_up(half, LANES)
    out_p = _round_up(A, LANES)

    def pad2(a, r, c):
        return jnp.pad(a, ((0, r - a.shape[0]), (0, c - a.shape[1])))

    w1p, b1p = pad2(w1, d_in_p, h0_p), pad2(b1, 1, h0_p)
    w2p, b2p = pad2(w2, h0_p, h1_p), pad2(b2, 1, h1_p)

    # Stage-1 head fusion: lanes [0, half_p) = value stream,
    #                      lanes [half_p, 2*half_p) = advantage stream.
    wh1 = jnp.zeros((h1_p, 2 * half_p), jnp.float32)
    wh1 = wh1.at[:h1, :half].set(wv1)
    wh1 = wh1.at[:h1, half_p:half_p + half].set(wa1)
    bh1 = jnp.zeros((1, 2 * half_p), jnp.float32)
    bh1 = bh1.at[:, :half].set(bv1)
    bh1 = bh1.at[:, half_p:half_p + half].set(ba1)

    # Stage-2 head fusion with the dueling combination pre-folded:
    #   q[:, j] = hh_v @ wv2 + bv2                      (value, broadcast over j)
    #           + hh_a @ (wa2[:, j] - mean_k wa2[:, k])
    #           + (ba2[j] - mean(ba2))
    wa2_centered = wa2 - jnp.mean(wa2, axis=1, keepdims=True)       # (half, A)
    ba2_centered = ba2 - jnp.mean(ba2, axis=1, keepdims=True)       # (1, A)

    wh2 = jnp.zeros((2 * half_p, out_p), jnp.float32)
    wh2 = wh2.at[:half, :A].set(jnp.broadcast_to(wv2, (half, A)))   # value -> all cols
    wh2 = wh2.at[half_p:half_p + half, :A].set(wa2_centered)        # centered advantages
    bh2 = jnp.zeros((1, out_p), jnp.float32)
    bh2 = bh2.at[:, :A].set(bv2 + ba2_centered)

    return (w1p, b1p, w2p, b2p, wh1, bh1, wh2, bh2)


def reference_forward(x, raw_params):
    """Plain-JAX reference (unpadded, unfused) for correctness check."""
    (w1, b1, w2, b2, wv1, bv1, wv2, bv2, wa1, ba1, wa2, ba2) = raw_params
    h = jnp.maximum(x @ w1 + b1, 0.0)
    f = jnp.maximum(h @ w2 + b2, 0.0)
    v = jnp.maximum(f @ wv1 + bv1, 0.0) @ wv2 + bv2
    a = jnp.maximum(f @ wa1 + ba1, 0.0) @ wa2 + ba2
    return v + (a - a.mean(axis=1, keepdims=True))


if __name__ == "__main__":
    batch = 2
    input_dim = 16
    hidden_dims = [32, 32]
    output_dim = 8

    key = jax.random.PRNGKey(0)
    k_x, k_p = jax.random.split(key)

    x = jax.random.normal(k_x, (batch, input_dim), dtype=jnp.float32)
    raw_params = make_params(k_p, input_dim, output_dim, hidden_dims)
    packed = prepare_params(raw_params, output_dim)

    q = dueling_mlp_forward(x, packed, output_dim)
    q = jax.block_until_ready(q)

    q_ref = reference_forward(x, raw_params)
    assert q.shape == (batch, output_dim)
    np.testing.assert_allclose(np.asarray(q), np.asarray(q_ref), rtol=1e-5, atol=1e-5)

    print("KERNEL_OK")
</pallas_src>

<mosaic_0001>
module attributes {stable_mosaic.version = 11 : i64} {
  func.func @dueling_mlp_kernel(%arg0: i32, %arg1: memref<8x128xf32, #tpu.memory_space<vmem>>, %arg2: memref<128x128xf32, #tpu.memory_space<vmem>>, %arg3: memref<1x128xf32, #tpu.memory_space<vmem>>, %arg4: memref<128x128xf32, #tpu.memory_space<vmem>>, %arg5: memref<1x128xf32, #tpu.memory_space<vmem>>, %arg6: memref<128x256xf32, #tpu.memory_space<vmem>>, %arg7: memref<1x256xf32, #tpu.memory_space<vmem>>, %arg8: memref<256x128xf32, #tpu.memory_space<vmem>>, %arg9: memref<1x128xf32, #tpu.memory_space<vmem>>, %arg10: memref<8x128xf32, #tpu.memory_space<vmem>>) attributes {dimension_semantics = [#tpu.dimension_semantics<parallel>], iteration_bounds = array<i64: 1>, scalar_prefetch = 0 : i64, scratch_operands = 0 : i64, tpu.core_type = #tpu.core_type<tc>, window_params = [{transform_indices = @transform_0, window_bounds = array<i64: 8, 128>}, {pipeline_mode = #tpu.pipeline_mode<synchronous>, transform_indices = @transform_1, window_bounds = array<i64: 128, 128>}, {pipeline_mode = #tpu.pipeline_mode<synchronous>, transform_indices = @transform_2, window_bounds = array<i64: 1, 128>}, {pipeline_mode = #tpu.pipeline_mode<synchronous>, transform_indices = @transform_3, window_bounds = array<i64: 128, 128>}, {pipeline_mode = #tpu.pipeline_mode<synchronous>, transform_indices = @transform_4, window_bounds = array<i64: 1, 128>}, {pipeline_mode = #tpu.pipeline_mode<synchronous>, transform_indices = @transform_5, window_bounds = array<i64: 128, 256>}, {pipeline_mode = #tpu.pipeline_mode<synchronous>, transform_indices = @transform_6, window_bounds = array<i64: 1, 256>}, {pipeline_mode = #tpu.pipeline_mode<synchronous>, transform_indices = @transform_7, window_bounds = array<i64: 256, 128>}, {pipeline_mode = #tpu.pipeline_mode<synchronous>, transform_indices = @transform_8, window_bounds = array<i64: 1, 128>}, {transform_indices = @transform_9, window_bounds = array<i64: 8, 128>}]} {
    %c0 = arith.constant 0 : index
    %c0_0 = arith.constant 0 : index
    %0 = vector.load %arg1[%c0, %c0_0] : memref<8x128xf32, #tpu.memory_space<vmem>>, vector<8x128xf32>
    %c0_1 = arith.constant 0 : index
    %c0_2 = arith.constant 0 : index
    %1 = vector.load %arg2[%c0_1, %c0_2] : memref<128x128xf32, #tpu.memory_space<vmem>>, vector<128x128xf32>
    %cst = arith.constant dense<0.000000e+00> : vector<8x128xf32>
    %2 = tpu.matmul %0, %1, %cst {dimension_numbers = #tpu.dot_dimension_numbers<[1], [0], [0], [1], [0, 0, 1, 1], [], []>} : vector<8x128xf32>, vector<128x128xf32>, vector<8x128xf32> -> vector<8x128xf32>
    %c0_3 = arith.constant 0 : index
    %c0_4 = arith.constant 0 : index
    %3 = vector.load %arg3[%c0_3, %c0_4] : memref<1x128xf32, #tpu.memory_space<vmem>>, vector<1x128xf32>
    %4 = vector.broadcast %3 : vector<1x128xf32> to vector<8x128xf32>
    %5 = arith.addf %2, %4 : vector<8x128xf32>
    %cst_5 = arith.constant 0.000000e+00 : f32
    %6 = vector.broadcast %cst_5 : f32 to vector<8x128xf32>
    %7 = arith.maximumf %5, %6 : vector<8x128xf32>
    %c0_6 = arith.constant 0 : index
    %c0_7 = arith.constant 0 : index
    %8 = vector.load %arg4[%c0_6, %c0_7] : memref<128x128xf32, #tpu.memory_space<vmem>>, vector<128x128xf32>
    %cst_8 = arith.constant dense<0.000000e+00> : vector<8x128xf32>
    %9 = tpu.matmul %7, %8, %cst_8 {dimension_numbers = #tpu.dot_dimension_numbers<[1], [0], [0], [1], [0, 0, 1, 1], [], []>} : vector<8x128xf32>, vector<128x128xf32>, vector<8x128xf32> -> vector<8x128xf32>
    %c0_9 = arith.constant 0 : index
    %c0_10 = arith.constant 0 : index
    %10 = vector.load %arg5[%c0_9, %c0_10] : memref<1x128xf32, #tpu.memory_space<vmem>>, vector<1x128xf32>
    %11 = vector.broadcast %10 : vector<1x128xf32> to vector<8x128xf32>
    %12 = arith.addf %9, %11 : vector<8x128xf32>
    %cst_11 = arith.constant 0.000000e+00 : f32
    %13 = vector.broadcast %cst_11 : f32 to vector<8x128xf32>
    %14 = arith.maximumf %12, %13 : vector<8x128xf32>
    %c0_12 = arith.constant 0 : index
    %c0_13 = arith.constant 0 : index
    %15 = vector.load %arg6[%c0_12, %c0_13] : memref<128x256xf32, #tpu.memory_space<vmem>>, vector<128x256xf32>
    %cst_14 = arith.constant dense<0.000000e+00> : vector<8x256xf32>
    %16 = tpu.matmul %14, %15, %cst_14 {dimension_numbers = #tpu.dot_dimension_numbers<[1], [0], [0], [1], [0, 0, 1, 1], [], []>} : vector<8x128xf32>, vector<128x256xf32>, vector<8x256xf32> -> vector<8x256xf32>
    %c0_15 = arith.constant 0 : index
    %c0_16 = arith.constant 0 : index
    %17 = vector.load %arg7[%c0_15, %c0_16] : memref<1x256xf32, #tpu.memory_space<vmem>>, vector<1x256xf32>
    %18 = vector.broadcast %17 : vector<1x256xf32> to vector<8x256xf32>
    %19 = arith.addf %16, %18 : vector<8x256xf32>
    %cst_17 = arith.constant 0.000000e+00 : f32
    %20 = vector.broadcast %cst_17 : f32 to vector<8x256xf32>
    %21 = arith.maximumf %19, %20 : vector<8x256xf32>
    %c0_18 = arith.constant 0 : index
    %c0_19 = arith.constant 0 : index
    %22 = vector.load %arg8[%c0_18, %c0_19] : memref<256x128xf32, #tpu.memory_space<vmem>>, vector<256x128xf32>
    %cst_20 = arith.constant dense<0.000000e+00> : vector<8x128xf32>
    %23 = tpu.matmul %21, %22, %cst_20 {dimension_numbers = #tpu.dot_dimension_numbers<[1], [0], [0], [1], [0, 0, 1, 1], [], []>} : vector<8x256xf32>, vector<256x128xf32>, vector<8x128xf32> -> vector<8x128xf32>
    %c0_21 = arith.constant 0 : index
    %c0_22 = arith.constant 0 : index
    %24 = vector.load %arg9[%c0_21, %c0_22] : memref<1x128xf32, #tpu.memory_space<vmem>>, vector<1x128xf32>
    %25 = vector.broadcast %24 : vector<1x128xf32> to vector<8x128xf32>
    %26 = arith.addf %23, %25 : vector<8x128xf32>
    %c0_23 = arith.constant 0 : index
    %c0_24 = arith.constant 0 : index
    %27 = vector.load %arg10[%c0_23, %c0_24] : memref<8x128xf32, #tpu.memory_space<vmem>>, vector<8x128xf32>
    tpu.vector_store %arg10[%c0_23, %c0_24], %26 {strides = array<i32>} : memref<8x128xf32, #tpu.memory_space<vmem>>, vector<8x128xf32>,
    return
  }
  func.func @transform_0(%arg0: i32) -> (i32, i32) {
    %c0_i32 = arith.constant 0 : i32
    %c0_i32_0 = arith.constant 0 : i32
    return %arg0, %c0_i32 : i32, i32
  }
  func.func @transform_1(%arg0: i32) -> (i32, i32) {
    %c0_i32 = arith.constant 0 : i32
    %c0_i32_0 = arith.constant 0 : i32
    %c0_i32_1 = arith.constant 0 : i32
    return %c0_i32, %c0_i32_0 : i32, i32
  }
  func.func @transform_2(%arg0: i32) -> (i32, i32) {
    %c0_i32 = arith.constant 0 : i32
    %c0_i32_0 = arith.constant 0 : i32
    %c0_i32_1 = arith.constant 0 : i32
    return %c0_i32, %c0_i32_0 : i32, i32
  }
  func.func @transform_3(%arg0: i32) -> (i32, i32) {
    %c0_i32 = arith.constant 0 : i32
    %c0_i32_0 = arith.constant 0 : i32
    %c0_i32_1 = arith.constant 0 : i32
    return %c0_i32, %c0_i32_0 : i32, i32
  }
  func.func @transform_4(%arg0: i32) -> (i32, i32) {
    %c0_i32 = arith.constant 0 : i32
    %c0_i32_0 = arith.constant 0 : i32
    %c0_i32_1 = arith.constant 0 : i32
    return %c0_i32, %c0_i32_0 : i32, i32
  }
  func.func @transform_5(%arg0: i32) -> (i32, i32) {
    %c0_i32 = arith.constant 0 : i32
    %c0_i32_0 = arith.constant 0 : i32
    %c0_i32_1 = arith.constant 0 : i32
    return %c0_i32, %c0_i32_0 : i32, i32
  }
  func.func @transform_6(%arg0: i32) -> (i32, i32) {
    %c0_i32 = arith.constant 0 : i32
    %c0_i32_0 = arith.constant 0 : i32
    %c0_i32_1 = arith.constant 0 : i32
    return %c0_i32, %c0_i32_0 : i32, i32
  }
  func.func @transform_7(%arg0: i32) -> (i32, i32) {
    %c0_i32 = arith.constant 0 : i32
    %c0_i32_0 = arith.constant 0 : i32
    %c0_i32_1 = arith.constant 0 : i32
    return %c0_i32, %c0_i32_0 : i32, i32
  }
  func.func @transform_8(%arg0: i32) -> (i32, i32) {
    %c0_i32 = arith.constant 0 : i32
    %c0_i32_0 = arith.constant 0 : i32
    %c0_i32_1 = arith.constant 0 : i32
    return %c0_i32, %c0_i32_0 : i32, i32
  }
  func.func @transform_9(%arg0: i32) -> (i32, i32) {
    %c0_i32 = arith.constant 0 : i32
    %c0_i32_0 = arith.constant 0 : i32
    return %arg0, %c0_i32 : i32, i32
  }
}

</mosaic_0001>

<llo_original>
// kernel: tpu_custom_call.1
$region0: #{tpu_custom_call.1}
  #allocation0 [shape = 'u32[]', space=smem, size = 0x4, offset = 0x4, fixed_abs, tag = 'smem constant byte address 0x4 - core index']
  #allocation1 [shape = 'u32[144,128]{1,0:T(1,128)}', space=vmem, size = 0x12000, scoped, tag = 'internal scratch']
  %s0 = inlined_call_operand.hbm [shape: f32[8,128], index: 0, kind: input, shape index: {}]
  %s1 = inlined_call_operand.hbm [shape: f32[128,128], index: 1, kind: input, shape index: {}]
  %s2 = inlined_call_operand.vmem [shape: f32[1,128], index: 2, kind: input, shape index: {}]
  %s3 = inlined_call_operand.hbm [shape: f32[128,128], index: 3, kind: input, shape index: {}]
  %s4 = inlined_call_operand.vmem [shape: f32[1,128], index: 4, kind: input, shape index: {}]
  %s5 = inlined_call_operand.hbm [shape: f32[128,256], index: 5, kind: input, shape index: {}]
  %s6 = inlined_call_operand.vmem [shape: f32[1,256], index: 6, kind: input, shape index: {}]
  %s7 = inlined_call_operand.hbm [shape: f32[256,128], index: 7, kind: input, shape index: {}]
  %s8 = inlined_call_operand.vmem [shape: f32[1,128], index: 8, kind: input, shape index: {}]
  %s9 = inlined_call_operand.hbm [shape: f32[8,128], index: 9, kind: output, shape index: {}]
  %s10 = sld [smem:[#allocation0]]
  $region66: #{tpu_custom_call.1} parent=0
    _
  %s12 = ssub.s32 1, %s10
  %s13 = scalar_select 0, %s12, %s10
  $region1: #{tpu_custom_call.1} parent=0
    #allocation2 [shape = 'u8[4096]{0}', space=vmem, size = 0x1000, scoped, tag = 'input window, operand 0, single buffered']
    #allocation3 [shape = 's32[1]{0}', space=sflag, size = 0x4, scoped, tag = 'scoped memory for tpu_custom_call.1']
    #allocation4 [shape = 's32[1]{0}', space=sflag, size = 0x4, scoped, tag = 'scoped memory for tpu_custom_call.1']
    #allocation5 [shape = 'u8[65536]{0}', space=vmem, size = 0x10000, scoped, tag = 'input window, operand 1, single buffered']
    #allocation6 [shape = 's32[1]{0}', space=sflag, size = 0x4, scoped, tag = 'scoped memory for tpu_custom_call.1']
    #allocation7 [shape = 'u8[65536]{0}', space=vmem, size = 0x10000, scoped, tag = 'input window, operand 3, single buffered']
    #allocation8 [shape = 'u8[131072]{0}', space=vmem, size = 0x20000, scoped, tag = 'input window, operand 5, single buffered']
    #allocation9 [shape = 's32[1]{0}', space=sflag, size = 0x4, scoped, tag = 'scoped memory for tpu_custom_call.1']
    #allocation10 [shape = 'u8[131072]{0}', space=vmem, size = 0x20000, scoped, tag = 'input window, operand 7, single buffered']
    #allocation11 [shape = 'u8[4096]{0}', space=vmem, size = 0x1000, scoped, tag = 'output window, operand 0, single buffered']
    %14 = vsyncpa [#allocation3], 0
    %15 = vsyncpa [#allocation6], 0
    %16 = vsyncpa [#allocation9], 0
    %17 = vsyncpa [#allocation4], 0
    // Predicated region
    $region2: #{tpu_custom_call.1} parent=1 // pred_check
      _
    $region3: #{tpu_custom_call.1} parent=1 // pred_check_branch
      %19 = sbr.rel (0) target = $region5
    $region4: #{tpu_custom_call.1} parent=1 // pred_region
      %s21 = ssub.s32 128, 128
      %22 = vsyncadd [#allocation3], %s21
      %s24 = sshll.u32 [#allocation2], 4
      %s25 = int_to_ptr.vmem [resolvable:$true] %s24
      %27 = dma.hbm_to_vmem [thread:$0]  %s0, 128, %s25, [#allocation3]
    $region5: #{tpu_custom_call.1} parent=1 // pred_fallthru
      _
    // Predicated region
    $region6: #{tpu_custom_call.1} parent=1 // pred_check
      _
    $region7: #{tpu_custom_call.1} parent=1 // pred_check_branch
      %29 = sbr.rel (0) target = $region9
    $region8: #{tpu_custom_call.1} parent=1 // pred_region
      %s31 = ssub.s32 2048, 2048
      %32 = vsyncadd [#allocation6], %s31
      %s33 = sshll.u32 [#allocation5], 4
      %s34 = int_to_ptr.vmem [resolvable:$true] %s33
      %39 = dma.hbm_to_vmem [thread:$0]  %s1, 2048, %s34, [#allocation6], 128, 128, 8
    $region9: #{tpu_custom_call.1} parent=1 // pred_fallthru
      _
    // Predicated region
    $region10: #{tpu_custom_call.1} parent=1 // pred_check
      _
    $region11: #{tpu_custom_call.1} parent=1 // pred_check_branch
      %41 = sbr.rel (0) target = $region13
    $region12: #{tpu_custom_call.1} parent=1 // pred_region
      _
    $region13: #{tpu_custom_call.1} parent=1 // pred_fallthru
      _
    // Predicated region
    $region14: #{tpu_custom_call.1} parent=1 // pred_check
      _
    $region15: #{tpu_custom_call.1} parent=1 // pred_check_branch
      %43 = sbr.rel (0) target = $region17
    $region16: #{tpu_custom_call.1} parent=1 // pred_region
      %s45 = ssub.s32 2048, 2048
      %46 = vsyncadd [#allocation6], %s45
      %s47 = sshll.u32 [#allocation7], 4
      %s48 = int_to_ptr.vmem [resolvable:$true] %s47
      %53 = dma.hbm_to_vmem [thread:$0]  %s3, 2048, %s48, [#allocation6], 128, 128, 8
    $region17: #{tpu_custom_call.1} parent=1 // pred_fallthru
      _
    // Predicated region
    $region18: #{tpu_custom_call.1} parent=1 // pred_check
      _
    $region19: #{tpu_custom_call.1} parent=1 // pred_check_branch
      %55 = sbr.rel (0) target = $region21
    $region20: #{tpu_custom_call.1} parent=1 // pred_region
      _
    $region21: #{tpu_custom_call.1} parent=1 // pred_fallthru
      _
    // Predicated region
    $region22: #{tpu_custom_call.1} parent=1 // pred_check
      _
    $region23: #{tpu_custom_call.1} parent=1 // pred_check_branch
      %57 = sbr.rel (0) target = $region25
    $region24: #{tpu_custom_call.1} parent=1 // pred_region
      %s59 = ssub.s32 4096, 4096
      %60 = vsyncadd [#allocation9], %s59
      %s61 = sshll.u32 [#allocation8], 4
      %s62 = int_to_ptr.vmem [resolvable:$true] %s61
      %67 = dma.hbm_to_vmem [thread:$0]  %s5, 4096, %s62, [#allocation9], 256, 256, 16
    $region25: #{tpu_custom_call.1} parent=1 // pred_fallthru
      _
    // Predicated region
    $region26: #{tpu_custom_call.1} parent=1 // pred_check
      _
    $region27: #{tpu_custom_call.1} parent=1 // pred_check_branch
      %69 = sbr.rel (0) target = $region29
    $region28: #{tpu_custom_call.1} parent=1 // pred_region
      _
    $region29: #{tpu_custom_call.1} parent=1 // pred_fallthru
      _
    // Predicated region
    $region30: #{tpu_custom_call.1} parent=1 // pred_check
      _
    $region31: #{tpu_custom_call.1} parent=1 // pred_check_branch
      %71 = sbr.rel (0) target = $region33
    $region32: #{tpu_custom_call.1} parent=1 // pred_region
      %s73 = ssub.s32 4096, 4096
      %74 = vsyncadd [#allocation9], %s73
      %s75 = sshll.u32 [#allocation10], 4
      %s76 = int_to_ptr.vmem [resolvable:$true] %s75
      %81 = dma.hbm_to_vmem [thread:$0]  %s7, 4096, %s76, [#allocation9], 128, 128, 8
    $region33: #{tpu_custom_call.1} parent=1 // pred_fallthru
      _
    // Predicated region
    $region34: #{tpu_custom_call.1} parent=1 // pred_check
      _
    $region35: #{tpu_custom_call.1} parent=1 // pred_check_branch
      %83 = sbr.rel (0) target = $region37
    $region36: #{tpu_custom_call.1} parent=1 // pred_region
      _
    $region37: #{tpu_custom_call.1} parent=1 // pred_fallthru
      _
    // Predicated region
    $region38: #{tpu_custom_call.1} parent=1 // pred_check
      _
    $region39: #{tpu_custom_call.1} parent=1 // pred_check_branch
      %85 = sbr.rel (0) target = $region41
    $region40: #{tpu_custom_call.1} parent=1 // pred_region
      %86 = dma.done [#allocation3], 128
    $region41: #{tpu_custom_call.1} parent=1 // pred_fallthru
      _
    // Predicated region
    $region42: #{tpu_custom_call.1} parent=1 // pred_check
      _
    $region43: #{tpu_custom_call.1} parent=1 // pred_check_branch
      %88 = sbr.rel (0) target = $region45
    $region44: #{tpu_custom_call.1} parent=1 // pred_region
      %89 = dma.done [#allocation6], 2048
    $region45: #{tpu_custom_call.1} parent=1 // pred_fallthru
      _
    // Predicated region
    $region46: #{tpu_custom_call.1} parent=1 // pred_check
      _
    $region47: #{tpu_custom_call.1} parent=1 // pred_check_branch
      %91 = sbr.rel (0) target = $region49
    $region48: #{tpu_custom_call.1} parent=1 // pred_region
      %92 = dma.done [#allocation6], 2048
    $region49: #{tpu_custom_call.1} parent=1 // pred_fallthru
      _
    // Predicated region
    $region50: #{tpu_custom_call.1} parent=1 // pred_check
      _
    $region51: #{tpu_custom_call.1} parent=1 // pred_check_branch
      %94 = sbr.rel (0) target = $region53
    $region52: #{tpu_custom_call.1} parent=1 // pred_region
      %95 = dma.done [#allocation9], 4096
    $region53: #{tpu_custom_call.1} parent=1 // pred_fallthru
      _
    // Predicated region
    $region54: #{tpu_custom_call.1} parent=1 // pred_check
      _
    $region55: #{tpu_custom_call.1} parent=1 // pred_check_branch
      %97 = sbr.rel (0) target = $region57
    $region56: #{tpu_custom_call.1} parent=1 // pred_region
      %98 = dma.done [#allocation9], 4096
    $region57: #{tpu_custom_call.1} parent=1 // pred_fallthru
      _
    %v99 = vld [vmem:[#allocation2] sm:$0xff]
    %v100 = vld [vmem:[#allocation5] sm:$0xff]
    %v101 = vld [vmem:[#allocation5 + $0x8] sm:$0xff]
    %v102 = vld [vmem:[#allocation5 + $0x10] sm:$0xff]
    %v103 = vld [vmem:[#allocation5 + $0x18] sm:$0xff]
    %v104 = vld [vmem:[#allocation5 + $0x20] sm:$0xff]
    %v105 = vld [vmem:[#allocation5 + $0x28] sm:$0xff]
    %v106 = vld [vmem:[#allocation5 + $0x30] sm:$0xff]
    %v107 = vld [vmem:[#allocation5 + $0x38] sm:$0xff]
    %v108 = vld [vmem:[#allocation5 + $0x40] sm:$0xff]
    %v109 = vld [vmem:[#allocation5 + $0x48] sm:$0xff]
    %v110 = vld [vmem:[#allocation5 + $0x50] sm:$0xff]
    %v111 = vld [vmem:[#allocation5 + $0x58] sm:$0xff]
    %v112 = vld [vmem:[#allocation5 + $0x60] sm:$0xff]
    %v113 = vld [vmem:[#allocation5 + $0x68] sm:$0xff]
    %v114 = vld [vmem:[#allocation5 + $0x70] sm:$0xff]
    %v115 = vld [vmem:[#allocation5 + $0x78] sm:$0xff]
    %v116 = vld [vmem:[%s2] sm:$0x1]
    %v118 = vlaneseq
    %v119 = vshrl.u32 %v118, 7
    %v120 = vsub.s32 0, %v119
    %v121 = vrot.slane %v116, %v120
    %123 = vmatprep.subr.mxu0 0.0
    %124 = vmatpush1.msra.mxu0 %v115
    %125 = vmatprep.subr.mxu0 0.0
    %126 = vmatpush1.msra.mxu0 %v114
    %127 = vmatprep.subr.mxu0 0.0
    %128 = vmatpush1.msra.mxu0 %v113
    %129 = vmatprep.subr.mxu0 0.0
    %130 = vmatpush1.msra.mxu0 %v112
    %131 = vmatprep.subr.mxu0 0.0
    %132 = vmatpush1.msra.mxu0 %v111
    %133 = vmatprep.subr.mxu0 0.0
    %134 = vmatpush1.msra.mxu0 %v110
    %135 = vmatprep.subr.mxu0 0.0
    %136 = vmatpush1.msra.mxu0 %v109
    %137 = vmatprep.subr.mxu0 0.0
    %138 = vmatpush1.msra.mxu0 %v108
    %139 = vmatprep.subr.mxu0 0.0
    %140 = vmatpush1.msra.mxu0 %v107
    %141 = vmatprep.subr.mxu0 0.0
    %142 = vmatpush1.msra.mxu0 %v106
    %143 = vmatprep.subr.mxu0 0.0
    %144 = vmatpush1.msra.mxu0 %v105
    %145 = vmatprep.subr.mxu0 0.0
    %146 = vmatpush1.msra.mxu0 %v104
    %147 = vmatprep.subr.mxu0 0.0
    %148 = vmatpush1.msra.mxu0 %v103
    %149 = vmatprep.subr.mxu0 0.0
    %150 = vmatpush1.msra.mxu0 %v102
    %151 = vmatprep.subr.mxu0 0.0
    %152 = vmatpush1.msra.mxu0 %v101
    %153 = vmatprep.subr.mxu0 0.0
    %154 = vmatpush1.msra.mxu0 %v100
    %155 = vmatprep.subr.mxu0 0.0
    %156 = vmatpush2.msra.mxu0 0.0
    %157 = vmatprep.subr.mxu0 0.0
    %158 = vmatpush2.msra.mxu0 0.0
    %159 = vmatprep.subr.mxu0 0.0
    %160 = vmatpush2.msra.mxu0 0.0
    %161 = vmatprep.subr.mxu0 0.0
    %162 = vmatpush2.msra.mxu0 0.0
    %163 = vmatprep.subr.mxu0 0.0
    %164 = vmatpush2.msra.mxu0 0.0
    %165 = vmatprep.subr.mxu0 0.0
    %166 = vmatpush2.msra.mxu0 0.0
    %167 = vmatprep.subr.mxu0 0.0
    %168 = vmatpush2.msra.mxu0 0.0
    %169 = vmatprep.subr.mxu0 0.0
    %170 = vmatpush2.msra.mxu0 0.0
    %171 = vmatprep.subr.mxu0 0.0
    %172 = vmatpush2.msra.mxu0 0.0
    %173 = vmatprep.subr.mxu0 0.0
    %174 = vmatpush2.msra.mxu0 0.0
    %175 = vmatprep.subr.mxu0 0.0
    %176 = vmatpush2.msra.mxu0 0.0
    %177 = vmatprep.subr.mxu0 0.0
    %178 = vmatpush2.msra.mxu0 0.0
    %179 = vmatprep.subr.mxu0 0.0
    %180 = vmatpush2.msra.mxu0 0.0
    %181 = vmatprep.subr.mxu0 0.0
    %182 = vmatpush2.msra.mxu0 0.0
    %183 = vmatprep.subr.mxu0 0.0
    %184 = vmatpush2.msra.mxu0 0.0
    %185 = vmatprep.subr.mxu0 0.0
    %186 = vmatpush2.msra.mxu0 0.0
    %187 = vmatprep.mubr.f32.mxu0 0.0
    %188 = vmatmul.mubr.f32.gmra.mxu0 %v99
    %v189 = vpop.f32.mrf.mxu0
    %v190 = vadd.f32 %v121, %v189
    %v191 = vpop.f32.mrf.mxu0
    %192 = vdwg.mxu0
    %v193 = vmax.f32 %v190, 0.0
    %v194 = vld [vmem:[#allocation7] sm:$0xff]
    %v195 = vld [vmem:[#allocation7 + $0x8] sm:$0xff]
    %v196 = vld [vmem:[#allocation7 + $0x10] sm:$0xff]
    %v197 = vld [vmem:[#allocation7 + $0x18] sm:$0xff]
    %v198 = vld [vmem:[#allocation7 + $0x20] sm:$0xff]
    %v199 = vld [vmem:[#allocation7 + $0x28] sm:$0xff]
    %v200 = vld [vmem:[#allocation7 + $0x30] sm:$0xff]
    %v201 = vld [vmem:[#allocation7 + $0x38] sm:$0xff]
    %v202 = vld [vmem:[#allocation7 + $0x40] sm:$0xff]
    %v203 = vld [vmem:[#allocation7 + $0x48] sm:$0xff]
    %v204 = vld [vmem:[#allocation7 + $0x50] sm:$0xff]
    %v205 = vld [vmem:[#allocation7 + $0x58] sm:$0xff]
    %v206 = vld [vmem:[#allocation7 + $0x60] sm:$0xff]
    %v207 = vld [vmem:[#allocation7 + $0x68] sm:$0xff]
    %v208 = vld [vmem:[#allocation7 + $0x70] sm:$0xff]
    %v209 = vld [vmem:[#allocation7 + $0x78] sm:$0xff]
    %v210 = vld [vmem:[%s4] sm:$0x1]
    %v212 = vlaneseq
    %v213 = vshrl.u32 %v212, 7
    %v214 = vsub.s32 0, %v213
    %v215 = vrot.slane %v210, %v214
    %217 = vmatprep.subr.mxu0 0.0
    %218 = vmatpush1.msra.mxu0 %v209
    %219 = vmatprep.subr.mxu0 0.0
    %220 = vmatpush1.msra.mxu0 %v208
    %221 = vmatprep.subr.mxu0 0.0
    %222 = vmatpush1.msra.mxu0 %v207
    %223 = vmatprep.subr.mxu0 0.0
    %224 = vmatpush1.msra.mxu0 %v206
    %225 = vmatprep.subr.mxu0 0.0
    %226 = vmatpush1.msra.mxu0 %v205
    %227 = vmatprep.subr.mxu0 0.0
    %228 = vmatpush1.msra.mxu0 %v204
    %229 = vmatprep.subr.mxu0 0.0
    %230 = vmatpush1.msra.mxu0 %v203
    %231 = vmatprep.subr.mxu0 0.0
    %232 = vmatpush1.msra.mxu0 %v202
    %233 = vmatprep.subr.mxu0 0.0
    %234 = vmatpush1.msra.mxu0 %v201
    %235 = vmatprep.subr.mxu0 0.0
    %236 = vmatpush1.msra.mxu0 %v200
    %237 = vmatprep.subr.mxu0 0.0
    %238 = vmatpush1.msra.mxu0 %v199
    %239 = vmatprep.subr.mxu0 0.0
    %240 = vmatpush1.msra.mxu0 %v198
    %241 = vmatprep.subr.mxu0 0.0
    %242 = vmatpush1.msra.mxu0 %v197
    %243 = vmatprep.subr.mxu0 0.0
    %244 = vmatpush1.msra.mxu0 %v196
    %245 = vmatprep.subr.mxu0 0.0
    %246 = vmatpush1.msra.mxu0 %v195
    %247 = vmatprep.subr.mxu0 0.0
    %248 = vmatpush1.msra.mxu0 %v194
    %249 = vmatprep.subr.mxu0 0.0
    %250 = vmatpush2.msra.mxu0 0.0
    %251 = vmatprep.subr.mxu0 0.0
    %252 = vmatpush2.msra.mxu0 0.0
    %253 = vmatprep.subr.mxu0 0.0
    %254 = vmatpush2.msra.mxu0 0.0
    %255 = vmatprep.subr.mxu0 0.0
    %256 = vmatpush2.msra.mxu0 0.0
    %257 = vmatprep.subr.mxu0 0.0
    %258 = vmatpush2.msra.mxu0 0.0
    %259 = vmatprep.subr.mxu0 0.0
    %260 = vmatpush2.msra.mxu0 0.0
    %261 = vmatprep.subr.mxu0 0.0
    %262 = vmatpush2.msra.mxu0 0.0
    %263 = vmatprep.subr.mxu0 0.0
    %264 = vmatpush2.msra.mxu0 0.0
    %265 = vmatprep.subr.mxu0 0.0
    %266 = vmatpush2.msra.mxu0 0.0
    %267 = vmatprep.subr.mxu0 0.0
    %268 = vmatpush2.msra.mxu0 0.0
    %269 = vmatprep.subr.mxu0 0.0
    %270 = vmatpush2.msra.mxu0 0.0
    %271 = vmatprep.subr.mxu0 0.0
    %272 = vmatpush2.msra.mxu0 0.0
    %273 = vmatprep.subr.mxu0 0.0
    %274 = vmatpush2.msra.mxu0 0.0
    %275 = vmatprep.subr.mxu0 0.0
    %276 = vmatpush2.msra.mxu0 0.0
    %277 = vmatprep.subr.mxu0 0.0
    %278 = vmatpush2.msra.mxu0 0.0
    %279 = vmatprep.subr.mxu0 0.0
    %280 = vmatpush2.msra.mxu0 0.0
    %281 = vmatprep.mubr.f32.mxu0 0.0
    %282 = vmatmul.mubr.f32.gmra.mxu0 %v193
    %v283 = vpop.f32.mrf.mxu0
    %v284 = vadd.f32 %v215, %v283
    %v285 = vpop.f32.mrf.mxu0
    %286 = vdwg.mxu0
    %v287 = vmax.f32 %v284, 0.0
    %v288 = vld [vmem:[#allocation8] sm:$0xff]
    %v289 = vld [vmem:[#allocation8 + $0x8] sm:$0xff]
    %v290 = vld [vmem:[#allocation8 + $0x10] sm:$0xff]
    %v291 = vld [vmem:[#allocation8 + $0x18] sm:$0xff]
    %v292 = vld [vmem:[#allocation8 + $0x20] sm:$0xff]
    %v293 = vld [vmem:[#allocation8 + $0x28] sm:$0xff]
    %v294 = vld [vmem:[#allocation8 + $0x30] sm:$0xff]
    %v295 = vld [vmem:[#allocation8 + $0x38] sm:$0xff]
    %v296 = vld [vmem:[#allocation8 + $0x40] sm:$0xff]
    %v297 = vld [vmem:[#allocation8 + $0x48] sm:$0xff]
    %v298 = vld [vmem:[#allocation8 + $0x50] sm:$0xff]
    %v299 = vld [vmem:[#allocation8 + $0x58] sm:$0xff]
    %v300 = vld [vmem:[#allocation8 + $0x60] sm:$0xff]
    %v301 = vld [vmem:[#allocation8 + $0x68] sm:$0xff]
    %v302 = vld [vmem:[#allocation8 + $0x70] sm:$0xff]
    %v303 = vld [vmem:[#allocation8 + $0x78] sm:$0xff]
    %v304 = vld [vmem:[#allocation8 + $0x80] sm:$0xff]
    %v305 = vld [vmem:[#allocation8 + $0x88] sm:$0xff]
    %v306 = vld [vmem:[#allocation8 + $0x90] sm:$0xff]
    %v307 = vld [vmem:[#allocation8 + $0x98] sm:$0xff]
    %v308 = vld [vmem:[#allocation8 + $0xa0] sm:$0xff]
    %v309 = vld [vmem:[#allocation8 + $0xa8] sm:$0xff]
    %v310 = vld [vmem:[#allocation8 + $0xb0] sm:$0xff]
    %v311 = vld [vmem:[#allocation8 + $0xb8] sm:$0xff]
    %v312 = vld [vmem:[#allocation8 + $0xc0] sm:$0xff]
    %v313 = vld [vmem:[#allocation8 + $0xc8] sm:$0xff]
    %v314 = vld [vmem:[#allocation8 + $0xd0] sm:$0xff]
    %v315 = vld [vmem:[#allocation8 + $0xd8] sm:$0xff]
    %v316 = vld [vmem:[#allocation8 + $0xe0] sm:$0xff]
    %v317 = vld [vmem:[#allocation8 + $0xe8] sm:$0xff]
    %v318 = vld [vmem:[#allocation8 + $0xf0] sm:$0xff]
    %v319 = vld [vmem:[#allocation8 + $0xf8] sm:$0xff]
    %v320 = vld [vmem:[%s6] sm:$0x3]
    %v322 = vlaneseq
    %v323 = vshrl.u32 %v322, 7
    %v324 = vsub.s32 0, %v323
    %v325 = vrot.slane %v320, %v324
    %v326 = vlaneseq
    %v327 = vshrl.u32 %v326, 7
    %v328 = vsub.s32 1, %v327
    %v329 = vrot.slane %v320, %v328
    %332 = vmatprep.subr.mxu0 %v319
    %333 = vmatpush1.msra.mxu0 %v318
    %334 = vmatprep.subr.mxu0 %v317
    %335 = vmatpush1.msra.mxu0 %v316
    %336 = vmatprep.subr.mxu0 %v315
    %337 = vmatpush1.msra.mxu0 %v314
    %338 = vmatprep.subr.mxu0 %v313
    %339 = vmatpush1.msra.mxu0 %v312
    %340 = vmatprep.subr.mxu0 %v311
    %341 = vmatpush1.msra.mxu0 %v310
    %342 = vmatprep.subr.mxu0 %v309
    %343 = vmatpush1.msra.mxu0 %v308
    %344 = vmatprep.subr.mxu0 %v307
    %345 = vmatpush1.msra.mxu0 %v306
    %346 = vmatprep.subr.mxu0 %v305
    %347 = vmatpush1.msra.mxu0 %v304
    %348 = vmatprep.subr.mxu0 %v303
    %349 = vmatpush1.msra.mxu0 %v302
    %350 = vmatprep.subr.mxu0 %v301
    %351 = vmatpush1.msra.mxu0 %v300
    %352 = vmatprep.subr.mxu0 %v299
    %353 = vmatpush1.msra.mxu0 %v298
    %354 = vmatprep.subr.mxu0 %v297
    %355 = vmatpush1.msra.mxu0 %v296
    %356 = vmatprep.subr.mxu0 %v295
    %357 = vmatpush1.msra.mxu0 %v294
    %358 = vmatprep.subr.mxu0 %v293
    %359 = vmatpush1.msra.mxu0 %v292
    %360 = vmatprep.subr.mxu0 %v291
    %361 = vmatpush1.msra.mxu0 %v290
    %362 = vmatprep.subr.mxu0 %v289
    %363 = vmatpush1.msra.mxu0 %v288
    %364 = vmatprep.subr.mxu0 0.0
    %365 = vmatpush2.msra.mxu0 0.0
    %366 = vmatprep.subr.mxu0 0.0
    %367 = vmatpush2.msra.mxu0 0.0
    %368 = vmatprep.subr.mxu0 0.0
    %369 = vmatpush2.msra.mxu0 0.0
    %370 = vmatprep.subr.mxu0 0.0
    %371 = vmatpush2.msra.mxu0 0.0
    %372 = vmatprep.subr.mxu0 0.0
    %373 = vmatpush2.msra.mxu0 0.0
    %374 = vmatprep.subr.mxu0 0.0
    %375 = vmatpush2.msra.mxu0 0.0
    %376 = vmatprep.subr.mxu0 0.0
    %377 = vmatpush2.msra.mxu0 0.0
    %378 = vmatprep.subr.mxu0 0.0
    %379 = vmatpush2.msra.mxu0 0.0
    %380 = vmatprep.subr.mxu0 0.0
    %381 = vmatpush2.msra.mxu0 0.0
    %382 = vmatprep.subr.mxu0 0.0
    %383 = vmatpush2.msra.mxu0 0.0
    %384 = vmatprep.subr.mxu0 0.0
    %385 = vmatpush2.msra.mxu0 0.0
    %386 = vmatprep.subr.mxu0 0.0
    %387 = vmatpush2.msra.mxu0 0.0
    %388 = vmatprep.subr.mxu0 0.0
    %389 = vmatpush2.msra.mxu0 0.0
    %390 = vmatprep.subr.mxu0 0.0
    %391 = vmatpush2.msra.mxu0 0.0
    %392 = vmatprep.subr.mxu0 0.0
    %393 = vmatpush2.msra.mxu0 0.0
    %394 = vmatprep.subr.mxu0 0.0
    %395 = vmatpush2.msra.mxu0 0.0
    %396 = vmatprep.mubr.f32.mxu0 0.0
    %397 = vmatmul.mubr.f32.gmra.mxu0 %v287
    %v398 = vpop.f32.mrf.mxu0
    %v399 = vadd.f32 %v325, %v398
    %v400 = vpop.f32.mrf.mxu0
    %v401 = vadd.f32 %v329, %v400
    %402 = vdwg.mxu0
    %v403 = vmax.f32 %v399, 0.0
    %v404 = vmax.f32 %v401, 0.0
    %v405 = vld [vmem:[#allocation10] sm:$0xff]
    %v406 = vld [vmem:[#allocation10 + $0x8] sm:$0xff]
    %v407 = vld [vmem:[#allocation10 + $0x10] sm:$0xff]
    %v408 = vld [vmem:[#allocation10 + $0x18] sm:$0xff]
    %v409 = vld [vmem:[#allocation10 + $0x20] sm:$0xff]
    %v410 = vld [vmem:[#allocation10 + $0x28] sm:$0xff]
    %v411 = vld [vmem:[#allocation10 + $0x30] sm:$0xff]
    %v412 = vld [vmem:[#allocation10 + $0x38] sm:$0xff]
    %v413 = vld [vmem:[#allocation10 + $0x40] sm:$0xff]
    %v414 = vld [vmem:[#allocation10 + $0x48] sm:$0xff]
    %v415 = vld [vmem:[#allocation10 + $0x50] sm:$0xff]
    %v416 = vld [vmem:[#allocation10 + $0x58] sm:$0xff]
    %v417 = vld [vmem:[#allocation10 + $0x60] sm:$0xff]
    %v418 = vld [vmem:[#allocation10 + $0x68] sm:$0xff]
    %v419 = vld [vmem:[#allocation10 + $0x70] sm:$0xff]
    %v420 = vld [vmem:[#allocation10 + $0x78] sm:$0xff]
    %v421 = vld [vmem:[#allocation10 + $0x80] sm:$0xff]
    %v422 = vld [vmem:[#allocation10 + $0x88] sm:$0xff]
    %v423 = vld [vmem:[#allocation10 + $0x90] sm:$0xff]
    %v424 = vld [vmem:[#allocation10 + $0x98] sm:$0xff]
    %v425 = vld [vmem:[#allocation10 + $0xa0] sm:$0xff]
    %v426 = vld [vmem:[#allocation10 + $0xa8] sm:$0xff]
    %v427 = vld [vmem:[#allocation10 + $0xb0] sm:$0xff]
    %v428 = vld [vmem:[#allocation10 + $0xb8] sm:$0xff]
    %v429 = vld [vmem:[#allocation10 + $0xc0] sm:$0xff]
    %v430 = vld [vmem:[#allocation10 + $0xc8] sm:$0xff]
    %v431 = vld [vmem:[#allocation10 + $0xd0] sm:$0xff]
    %v432 = vld [vmem:[#allocation10 + $0xd8] sm:$0xff]
    %v433 = vld [vmem:[#allocation10 + $0xe0] sm:$0xff]
    %v434 = vld [vmem:[#allocation10 + $0xe8] sm:$0xff]
    %v435 = vld [vmem:[#allocation10 + $0xf0] sm:$0xff]
    %v436 = vld [vmem:[#allocation10 + $0xf8] sm:$0xff]
    %v437 = vld [vmem:[%s8] sm:$0x1]
    %v439 = vlaneseq
    %v440 = vshrl.u32 %v439, 7
    %v441 = vsub.s32 0, %v440
    %v442 = vrot.slane %v437, %v441
    %444 = vmatprep.subr.mxu0 0.0
    %445 = vmatpush1.msra.mxu0 %v420
    %446 = vmatprep.subr.mxu0 0.0
    %447 = vmatpush1.msra.mxu0 %v419
    %448 = vmatprep.subr.mxu0 0.0
    %449 = vmatpush1.msra.mxu0 %v418
    %450 = vmatprep.subr.mxu0 0.0
    %451 = vmatpush1.msra.mxu0 %v417
    %452 = vmatprep.subr.mxu0 0.0
    %453 = vmatpush1.msra.mxu0 %v416
    %454 = vmatprep.subr.mxu0 0.0
    %455 = vmatpush1.msra.mxu0 %v415
    %456 = vmatprep.subr.mxu0 0.0
    %457 = vmatpush1.msra.mxu0 %v414
    %458 = vmatprep.subr.mxu0 0.0
    %459 = vmatpush1.msra.mxu0 %v413
    %460 = vmatprep.subr.mxu0 0.0
    %461 = vmatpush1.msra.mxu0 %v412
    %462 = vmatprep.subr.mxu0 0.0
    %463 = vmatpush1.msra.mxu0 %v411
    %464 = vmatprep.subr.mxu0 0.0
    %465 = vmatpush1.msra.mxu0 %v410
    %466 = vmatprep.subr.mxu0 0.0
    %467 = vmatpush1.msra.mxu0 %v409
    %468 = vmatprep.subr.mxu0 0.0
    %469 = vmatpush1.msra.mxu0 %v408
    %470 = vmatprep.subr.mxu0 0.0
    %471 = vmatpush1.msra.mxu0 %v407
    %472 = vmatprep.subr.mxu0 0.0
    %473 = vmatpush1.msra.mxu0 %v406
    %474 = vmatprep.subr.mxu0 0.0
    %475 = vmatpush1.msra.mxu0 %v405
    %476 = vmatprep.subr.mxu0 0.0
    %477 = vmatpush2.msra.mxu0 %v436
    %478 = vmatprep.subr.mxu0 0.0
    %479 = vmatpush2.msra.mxu0 %v435
    %480 = vmatprep.subr.mxu0 0.0
    %481 = vmatpush2.msra.mxu0 %v434
    %482 = vmatprep.subr.mxu0 0.0
    %483 = vmatpush2.msra.mxu0 %v433
    %484 = vmatprep.subr.mxu0 0.0
    %485 = vmatpush2.msra.mxu0 %v432
    %486 = vmatprep.subr.mxu0 0.0
    %487 = vmatpush2.msra.mxu0 %v431
    %488 = vmatprep.subr.mxu0 0.0
    %489 = vmatpush2.msra.mxu0 %v430
    %490 = vmatprep.subr.mxu0 0.0
    %491 = vmatpush2.msra.mxu0 %v429
    %492 = vmatprep.subr.mxu0 0.0
    %493 = vmatpush2.msra.mxu0 %v428
    %494 = vmatprep.subr.mxu0 0.0
    %495 = vmatpush2.msra.mxu0 %v427
    %496 = vmatprep.subr.mxu0 0.0
    %497 = vmatpush2.msra.mxu0 %v426
    %498 = vmatprep.subr.mxu0 0.0
    %499 = vmatpush2.msra.mxu0 %v425
    %500 = vmatprep.subr.mxu0 0.0
    %501 = vmatpush2.msra.mxu0 %v424
    %502 = vmatprep.subr.mxu0 0.0
    %503 = vmatpush2.msra.mxu0 %v423
    %504 = vmatprep.subr.mxu0 0.0
    %505 = vmatpush2.msra.mxu0 %v422
    %506 = vmatprep.subr.mxu0 0.0
    %507 = vmatpush2.msra.mxu0 %v421
    %508 = vmatprep.mubr.f32.mxu0 %v404
    %509 = vmatmul.mubr.f32.gmra.mxu0 %v403
    %v510 = vpop.f32.mrf.mxu0
    %v511 = vadd.f32 %v442, %v510
    %v512 = vpop.f32.mrf.mxu0
    %513 = vdwg.mxu0
    %514 = vst [vmem:[#allocation11] sm:$0xff] %v511
    // Predicated region
    $region58: #{tpu_custom_call.1} parent=1 // pred_check
      _
    $region59: #{tpu_custom_call.1} parent=1 // pred_check_branch
      %516 = sbr.rel (0) target = $region61
    $region60: #{tpu_custom_call.1} parent=1 // pred_region
      %s518 = ssub.s32 128, 128
      %519 = vsyncadd [#allocation4], %s518
      %s521 = sshll.u32 [#allocation11], 4
      %s522 = int_to_ptr.vmem [resolvable:$true] %s521
      %524 = dma.vmem_to_hbm [thread:$0]  %s522, 128, %s9, [#allocation4]
    $region61: #{tpu_custom_call.1} parent=1 // pred_fallthru
      _
    // Predicated region
    $region62: #{tpu_custom_call.1} parent=1 // pred_check
      _
    $region63: #{tpu_custom_call.1} parent=1 // pred_check_branch
      %526 = sbr.rel (0) target = $region65
    $region64: #{tpu_custom_call.1} parent=1 // pred_region
      %527 = dma.done [#allocation4], 128
    $region65: #{tpu_custom_call.1} parent=1 // pred_fallthru
      _
    %528 = vsyncpa [#allocation3], 1
    %529 = vsyncpa [#allocation6], 1
    %530 = vsyncpa [#allocation9], 1
    %531 = vsyncpa [#allocation4], 1

</llo_original>
